<compile_context>
chip_gen: v7x
topology: tpu7x:2x2x1
jax: 0.10.0
libtpu: 0.0.40
codegen_flags: <defaults>
</compile_context>

<pallas_src>
import functools

import jax
import jax.numpy as jnp
import numpy as np
from jax.experimental import pallas as pl
from jax.experimental.pallas import tpu as pltpu

BN_EPS = 1e-5
TILE_M_MAX = 2048          # pixel-axis (lane) tile; multiple of 128.
LANE = 128
VMEM_LIMIT = 48 * 1024 * 1024   # leaves headroom on v7x's 64 MiB VMEM.


def _round_up(x, m):
    return (x + m - 1) // m * m


def _stats_kernel(x_ref, w_ref, sum_ref, sumsq_ref, *, m_valid, tile_m, needs_mask):
    """Pass (a): y = W @ x per pixel tile; write per-tile per-channel
    sum / sum-of-squares partials (combined in the wrapper)."""
    y = jnp.dot(w_ref[...], x_ref[...], preferred_element_type=jnp.float32)  # (N, tile_m)
    if needs_mask:
        col = (pl.program_id(0) * tile_m
               + jax.lax.broadcasted_iota(jnp.int32, (1, tile_m), 1))
        y = jnp.where(col < m_valid, y, 0.0)          # zero out ragged-edge garbage
    sum_ref[...] = jnp.sum(y, axis=1, keepdims=True)[None]        # (1, N, 1)
    sumsq_ref[...] = jnp.sum(y * y, axis=1, keepdims=True)[None]  # (1, N, 1)


def _apply_kernel(x_ref, w_ref, scale_ref, shift_ref, o_ref):
    """Pass (b): recompute y = W @ x, apply folded BN (scale/shift) + ReLU,
    store in the (possibly bf16) output dtype."""
    y = jnp.dot(w_ref[...], x_ref[...], preferred_element_type=jnp.float32)  # (N, tile_m)
    y = y * scale_ref[...] + shift_ref[...]          # (N,1) broadcast along lanes, f32
    o_ref[...] = jnp.maximum(y, 0.0).astype(o_ref.dtype)


def _conv_bn_relu(x_km, w_nk, gamma, beta, m_valid):
    """x_km : (K, M) compute dtype, channel-major slab (pixels on lanes).
       w_nk : (N, K) compute dtype (conv weight, no transpose needed).
       gamma/beta: (N, 1) f32.  m_valid: true pixel count (python int)."""
    K, M = x_km.shape
    N = w_nk.shape[0]

    # Lane-dense pixel tile; ragged last tile handled inside the kernels.
    tile_m = min(TILE_M_MAX, _round_up(M, LANE))
    num_tiles = pl.cdiv(M, tile_m)
    grid = (num_tiles,)
    needs_mask = (num_tiles * tile_m != M)

    x_spec = pl.BlockSpec((K, tile_m), lambda i: (0, i))
    w_spec = pl.BlockSpec((N, K), lambda i: (0, 0))        # same block every step
    vec_spec = pl.BlockSpec((N, 1), lambda i: (0, 0))      # folded BN constants
    stat_spec = pl.BlockSpec((1, N, 1), lambda i: (i, 0, 0))

    x_bytes = K * M * x_km.dtype.itemsize
    w_bytes = N * K * w_nk.dtype.itemsize
    matmul_flops = 2 * M * K * N

    # ---- pass (a): per-tile partial batch statistics (fully parallel grid) ----
    sums, sumsqs = pl.pallas_call(
        functools.partial(_stats_kernel, m_valid=m_valid, tile_m=tile_m,
                          needs_mask=needs_mask),
        out_shape=(jax.ShapeDtypeStruct((num_tiles, N, 1), jnp.float32),
                   jax.ShapeDtypeStruct((num_tiles, N, 1), jnp.float32)),
        grid=grid,
        in_specs=[x_spec, w_spec],
        out_specs=(stat_spec, stat_spec),
        compiler_params=pltpu.CompilerParams(
            dimension_semantics=("parallel",),
            vmem_limit_bytes=VMEM_LIMIT),
        cost_estimate=pl.CostEstimate(
            flops=matmul_flops + 4 * M * N, transcendentals=0,
            bytes_accessed=x_bytes + w_bytes + 2 * num_tiles * N * 4),
    )(x_km, w_nk)

    # Combine partials and fold BN into per-channel scale/shift (tiny (N,) math).
    total = jnp.sum(sums, axis=0)                       # (N, 1) f32
    total_sq = jnp.sum(sumsqs, axis=0)                  # (N, 1) f32
    mean = total / m_valid
    var = jnp.maximum(total_sq / m_valid - mean * mean, 0.0)   # biased batch variance
    inv_std = jax.lax.rsqrt(var + BN_EPS)
    scale = gamma * inv_std
    shift = beta - mean * scale

    # ---- pass (b): apply pass, fully parallel over pixel tiles ----
    out = pl.pallas_call(
        _apply_kernel,
        out_shape=jax.ShapeDtypeStruct((N, M), x_km.dtype),
        grid=grid,
        in_specs=[x_spec, w_spec, vec_spec, vec_spec],
        out_specs=pl.BlockSpec((N, tile_m), lambda i: (0, i)),
        compiler_params=pltpu.CompilerParams(
            dimension_semantics=("parallel",),
            vmem_limit_bytes=VMEM_LIMIT),
        cost_estimate=pl.CostEstimate(
            flops=matmul_flops + 2 * M * N, transcendentals=0,
            bytes_accessed=x_bytes + w_bytes + N * M * x_km.dtype.itemsize),
    )(x_km, w_nk, scale, shift)
    return out


@functools.partial(jax.jit, static_argnames=("compute_dtype",))
def fourier_unit_forward(x, conv_w, bn_gamma, bn_beta, compute_dtype=jnp.bfloat16):
    """FourierUnit.forward (groups=1, no spectral_pos_encoding, no SE, ffc3d=False,
    fft_norm='ortho', spatial_scale_factor=None).  BatchNorm2d uses training-mode
    batch statistics (as a freshly constructed PyTorch module would)."""
    B, C, H, W = x.shape
    # rfftn over (-2,-1), ortho norm.  TODO(synk): no Pallas FFT primitive -> jnp.fft.
    ffted = jnp.fft.rfftn(x.astype(jnp.float32), axes=(-2, -1), norm="ortho")
    Wf = ffted.shape[-1]

    K = 2 * C
    N = conv_w.shape[0]                 # 2*Cout
    M = B * H * Wf

    # (B,C,H,Wf) complex -> channel-major slab (2C, B*H*Wf); row order
    # [c0_re, c0_im, c1_re, ...] matches torch's stack+permute+view.  One transpose,
    # cast to the compute dtype first so the transpose moves half the bytes.
    re_im = jnp.stack((jnp.real(ffted), jnp.imag(ffted)), axis=2)    # (B,C,2,H,Wf)
    re_im = re_im.astype(compute_dtype)
    x_km = jnp.transpose(re_im, (1, 2, 0, 3, 4)).reshape(K, M)       # (2C, M)

    # Conv2d(k=1, bias=False) weight (N, K, 1, 1) -> (N, K); no transpose needed.
    w_nk = conv_w.reshape(N, K).astype(compute_dtype)
    gamma = bn_gamma.astype(jnp.float32).reshape(N, 1)
    beta = bn_beta.astype(jnp.float32).reshape(N, 1)

    out_km = _conv_bn_relu(x_km, w_nk, gamma, beta, M)               # (N, M)

    # Back to (B, Cout, H, Wf) complex, then inverse rfft.  One transpose.
    out = out_km.astype(jnp.float32).reshape(N // 2, 2, B, H, Wf)
    comp = out[:, 0] + 1j * out[:, 1]                                # (Cout,B,H,Wf)
    comp = jnp.transpose(comp, (1, 0, 2, 3))                         # (B,Cout,H,Wf)
    result = jnp.fft.irfftn(comp, s=(H, W), axes=(-2, -1), norm="ortho")
    return result.astype(x.dtype)


def _reference_forward(x, conv_w, bn_gamma, bn_beta):
    """Pure-JAX f32 reference (same math as the PyTorch module, no Pallas)."""
    B, C, H, W = x.shape
    ffted = jnp.fft.rfftn(x, axes=(-2, -1), norm="ortho")
    ff = jnp.stack((jnp.real(ffted), jnp.imag(ffted)), axis=-1)
    ff = jnp.transpose(ff, (0, 1, 4, 2, 3)).reshape(B, C * 2, H, -1)
    N = conv_w.shape[0]
    w2d = conv_w.reshape(N, C * 2)
    y = jnp.einsum("bkhw,nk->bnhw", ff, w2d)
    mean = jnp.mean(y, axis=(0, 2, 3), keepdims=True)
    var = jnp.mean((y - mean) ** 2, axis=(0, 2, 3), keepdims=True)
    y = (y - mean) / jnp.sqrt(var + BN_EPS)
    y = y * bn_gamma.reshape(1, N, 1, 1) + bn_beta.reshape(1, N, 1, 1)
    y = jnp.maximum(y, 0.0)
    y = y.reshape(B, N // 2, 2, H, -1).transpose(0, 1, 3, 4, 2)
    comp = y[..., 0] + 1j * y[..., 1]
    return jnp.fft.irfftn(comp, s=(H, W), axes=(-2, -1), norm="ortho")


if __name__ == "__main__":
    # FourierUnit(in_channels=4, out_channels=4, groups=1)
    in_channels, out_channels = 4, 4
    B, H, W = 2, 16, 16

    key = jax.random.PRNGKey(0)
    kx, kw = jax.random.split(key)
    x = jax.random.normal(kx, (B, in_channels, H, W), dtype=jnp.float32)
    # Conv2d(in=2*Cin, out=2*Cout, k=1, bias=False) weight: (2*Cout, 2*Cin, 1, 1)
    conv_w = 0.1 * jax.random.normal(
        kw, (out_channels * 2, in_channels * 2, 1, 1), dtype=jnp.float32)
    # BatchNorm2d(2*Cout) default init: weight=1, bias=0
    bn_gamma = jnp.ones((out_channels * 2,), dtype=jnp.float32)
    bn_beta = jnp.zeros((out_channels * 2,), dtype=jnp.float32)

    ref = jax.block_until_ready(_reference_forward(x, conv_w, bn_gamma, bn_beta))

    # f32 MXU path: tight correctness check of the tiled two-pass kernels.
    out_f32 = jax.block_until_ready(
        fourier_unit_forward(x, conv_w, bn_gamma, bn_beta, compute_dtype=jnp.float32))
    np.testing.assert_allclose(np.asarray(out_f32), np.asarray(ref),
                               rtol=1e-4, atol=1e-4)

    # bf16 matmul/store path (default; halves x and output HBM streams): looser tol.
    out_bf16 = jax.block_until_ready(
        fourier_unit_forward(x, conv_w, bn_gamma, bn_beta))
    np.testing.assert_allclose(np.asarray(out_bf16), np.asarray(ref),
                               rtol=1e-1, atol=1e-1)

    assert out_bf16.shape == (B, out_channels, H, W)
    print("KERNEL_OK")
</pallas_src>

<mosaic_0001>
module attributes {stable_mosaic.version = 11 : i64} {
  func.func @_apply_kernel(%arg0: i32, %arg1: memref<8x384xf32, #tpu.memory_space<vmem>>, %arg2: memref<8x8xf32, #tpu.memory_space<vmem>>, %arg3: memref<8x1xf32, #tpu.memory_space<vmem>>, %arg4: memref<8x1xf32, #tpu.memory_space<vmem>>, %arg5: memref<8x384xf32, #tpu.memory_space<vmem>>) attributes {dimension_semantics = [#tpu.dimension_semantics<parallel>], iteration_bounds = array<i64: 1>, scalar_prefetch = 0 : i64, scratch_operands = 0 : i64, tpu.core_type = #tpu.core_type<tc>, window_params = [{transform_indices = @transform_0, window_bounds = array<i64: 8, 384>}, {pipeline_mode = #tpu.pipeline_mode<synchronous>, transform_indices = @transform_1, window_bounds = array<i64: 8, 8>}, {pipeline_mode = #tpu.pipeline_mode<synchronous>, transform_indices = @transform_2, window_bounds = array<i64: 8, 1>}, {pipeline_mode = #tpu.pipeline_mode<synchronous>, transform_indices = @transform_3, window_bounds = array<i64: 8, 1>}, {transform_indices = @transform_4, window_bounds = array<i64: 8, 384>}]} {
    %c0 = arith.constant 0 : index
    %c0_0 = arith.constant 0 : index
    %0 = vector.load %arg2[%c0, %c0_0] : memref<8x8xf32, #tpu.memory_space<vmem>>, vector<8x8xf32>
    %c0_1 = arith.constant 0 : index
    %c0_2 = arith.constant 0 : index
    %1 = vector.load %arg1[%c0_1, %c0_2] : memref<8x384xf32, #tpu.memory_space<vmem>>, vector<8x384xf32>
    %cst = arith.constant dense<0.000000e+00> : vector<8x384xf32>
    %2 = tpu.matmul %0, %1, %cst {dimension_numbers = #tpu.dot_dimension_numbers<[1], [0], [0], [1], [0, 0, 1, 1], [], []>} : vector<8x8xf32>, vector<8x384xf32>, vector<8x384xf32> -> vector<8x384xf32>
    %c0_3 = arith.constant 0 : index
    %c0_4 = arith.constant 0 : index
    %3 = vector.load %arg3[%c0_3, %c0_4] : memref<8x1xf32, #tpu.memory_space<vmem>>, vector<8x1xf32>
    %4 = vector.broadcast %3 : vector<8x1xf32> to vector<8x384xf32>
    %5 = arith.mulf %2, %4 : vector<8x384xf32>
    %c0_5 = arith.constant 0 : index
    %c0_6 = arith.constant 0 : index
    %6 = vector.load %arg4[%c0_5, %c0_6] : memref<8x1xf32, #tpu.memory_space<vmem>>, vector<8x1xf32>
    %7 = vector.broadcast %6 : vector<8x1xf32> to vector<8x384xf32>
    %8 = arith.addf %5, %7 : vector<8x384xf32>
    %cst_7 = arith.constant 0.000000e+00 : f32
    %9 = vector.broadcast %cst_7 : f32 to vector<8x384xf32>
    %10 = arith.maximumf %8, %9 : vector<8x384xf32>
    %c0_8 = arith.constant 0 : index
    %c0_9 = arith.constant 0 : index
    %11 = vector.load %arg5[%c0_8, %c0_9] : memref<8x384xf32, #tpu.memory_space<vmem>>, vector<8x384xf32>
    tpu.vector_store %arg5[%c0_8, %c0_9], %10 {strides = array<i32>} : memref<8x384xf32, #tpu.memory_space<vmem>>, vector<8x384xf32>,
    return
  }
  func.func @transform_0(%arg0: i32) -> (i32, i32) {
    %c0_i32 = arith.constant 0 : i32
    %c0_i32_0 = arith.constant 0 : i32
    return %c0_i32, %arg0 : i32, i32
  }
  func.func @transform_1(%arg0: i32) -> (i32, i32) {
    %c0_i32 = arith.constant 0 : i32
    %c0_i32_0 = arith.constant 0 : i32
    %c0_i32_1 = arith.constant 0 : i32
    return %c0_i32, %c0_i32_0 : i32, i32
  }
  func.func @transform_2(%arg0: i32) -> (i32, i32) {
    %c0_i32 = arith.constant 0 : i32
    %c0_i32_0 = arith.constant 0 : i32
    %c0_i32_1 = arith.constant 0 : i32
    return %c0_i32, %c0_i32_0 : i32, i32
  }
  func.func @transform_3(%arg0: i32) -> (i32, i32) {
    %c0_i32 = arith.constant 0 : i32
    %c0_i32_0 = arith.constant 0 : i32
    %c0_i32_1 = arith.constant 0 : i32
    return %c0_i32, %c0_i32_0 : i32, i32
  }
  func.func @transform_4(%arg0: i32) -> (i32, i32) {
    %c0_i32 = arith.constant 0 : i32
    %c0_i32_0 = arith.constant 0 : i32
    return %c0_i32, %arg0 : i32, i32
  }
}

module attributes {stable_mosaic.version = 11 : i64} {
  func.func @_stats_kernel(%arg0: i32, %arg1: memref<8x384xf32, #tpu.memory_space<vmem>>, %arg2: memref<8x8xf32, #tpu.memory_space<vmem>>, %arg3: memref<1x8x1xf32, #tpu.memory_space<vmem>>, %arg4: memref<1x8x1xf32, #tpu.memory_space<vmem>>) attributes {dimension_semantics = [#tpu.dimension_semantics<parallel>], iteration_bounds = array<i64: 1>, scalar_prefetch = 0 : i64, scratch_operands = 0 : i64, tpu.core_type = #tpu.core_type<tc>, window_params = [{transform_indices = @transform_0, window_bounds = array<i64: 8, 384>}, {pipeline_mode = #tpu.pipeline_mode<synchronous>, transform_indices = @transform_1, window_bounds = array<i64: 8, 8>}, {transform_indices = @transform_2, window_bounds = array<i64: 1, 8, 1>}, {transform_indices = @transform_3, window_bounds = array<i64: 1, 8, 1>}]} {
    %c0 = arith.constant 0 : index
    %c0_0 = arith.constant 0 : index
    %0 = vector.load %arg2[%c0, %c0_0] : memref<8x8xf32, #tpu.memory_space<vmem>>, vector<8x8xf32>
    %c0_1 = arith.constant 0 : index
    %c0_2 = arith.constant 0 : index
    %1 = vector.load %arg1[%c0_1, %c0_2] : memref<8x384xf32, #tpu.memory_space<vmem>>, vector<8x384xf32>
    %cst = arith.constant dense<0.000000e+00> : vector<8x384xf32>
    %2 = tpu.matmul %0, %1, %cst {dimension_numbers = #tpu.dot_dimension_numbers<[1], [0], [0], [1], [0, 0, 1, 1], [], []>} : vector<8x8xf32>, vector<8x384xf32>, vector<8x384xf32> -> vector<8x384xf32>
    %c384_i32 = arith.constant 384 : i32
    %3 = arith.muli %arg0, %c384_i32 : i32
    %4 = tpu.iota {dimensions = array<i32: 1>} : vector<1x384xi32>
    %5 = vector.broadcast %3 : i32 to vector<1x384xi32>
    %6 = arith.addi %5, %4 : vector<1x384xi32>
    %c288_i32 = arith.constant 288 : i32
    %7 = vector.broadcast %c288_i32 : i32 to vector<1x384xi32>
    %8 = arith.cmpi slt, %6, %7 : vector<1x384xi32>
    %cst_3 = arith.constant 0.000000e+00 : f32
    %9 = vector.shape_cast %8 : vector<1x384xi1> to vector<1x384xi1>
    %10 = vector.broadcast %9 : vector<1x384xi1> to vector<8x384xi1>
    %11 = vector.broadcast %cst_3 : f32 to vector<8x384xf32>
    %12 = arith.select %10, %2, %11 : vector<8x384xi1>, vector<8x384xf32>
    %cst_4 = arith.constant dense<0.000000e+00> : vector<8xf32>
    %13 = vector.multi_reduction <add>, %12, %cst_4 [1] : vector<8x384xf32> to vector<8xf32>
    %14 = vector.shape_cast %13 : vector<8xf32> to vector<8x1xf32>
    %15 = vector.shape_cast %14 : vector<8x1xf32> to vector<1x8x1xf32>
    %c0_5 = arith.constant 0 : index
    %c0_6 = arith.constant 0 : index
    %c0_7 = arith.constant 0 : index
    %16 = vector.load %arg3[%c0_5, %c0_6, %c0_7] : memref<1x8x1xf32, #tpu.memory_space<vmem>>, vector<1x8x1xf32>
    tpu.vector_store %arg3[%c0_5, %c0_6, %c0_7], %15 {strides = array<i32>} : memref<1x8x1xf32, #tpu.memory_space<vmem>>, vector<1x8x1xf32>,
    %17 = arith.mulf %12, %12 : vector<8x384xf32>
    %cst_8 = arith.constant dense<0.000000e+00> : vector<8xf32>
    %18 = vector.multi_reduction <add>, %17, %cst_8 [1] : vector<8x384xf32> to vector<8xf32>
    %19 = vector.shape_cast %18 : vector<8xf32> to vector<8x1xf32>
    %20 = vector.shape_cast %19 : vector<8x1xf32> to vector<1x8x1xf32>
    %c0_9 = arith.constant 0 : index
    %c0_10 = arith.constant 0 : index
    %c0_11 = arith.constant 0 : index
    %21 = vector.load %arg4[%c0_9, %c0_10, %c0_11] : memref<1x8x1xf32, #tpu.memory_space<vmem>>, vector<1x8x1xf32>
    tpu.vector_store %arg4[%c0_9, %c0_10, %c0_11], %20 {strides = array<i32>} : memref<1x8x1xf32, #tpu.memory_space<vmem>>, vector<1x8x1xf32>,
    return
  }
  func.func @transform_0(%arg0: i32) -> (i32, i32) {
    %c0_i32 = arith.constant 0 : i32
    %c0_i32_0 = arith.constant 0 : i32
    return %c0_i32, %arg0 : i32, i32
  }
  func.func @transform_1(%arg0: i32) -> (i32, i32) {
    %c0_i32 = arith.constant 0 : i32
    %c0_i32_0 = arith.constant 0 : i32
    %c0_i32_1 = arith.constant 0 : i32
    return %c0_i32, %c0_i32_0 : i32, i32
  }
  func.func @transform_2(%arg0: i32) -> (i32, i32, i32) {
    %c0_i32 = arith.constant 0 : i32
    %c0_i32_0 = arith.constant 0 : i32
    %c0_i32_1 = arith.constant 0 : i32
    return %arg0, %c0_i32, %c0_i32_0 : i32, i32, i32
  }
  func.func @transform_3(%arg0: i32) -> (i32, i32, i32) {
    %c0_i32 = arith.constant 0 : i32
    %c0_i32_0 = arith.constant 0 : i32
    %c0_i32_1 = arith.constant 0 : i32
    return %arg0, %c0_i32, %c0_i32_0 : i32, i32, i32
  }
}

</mosaic_0001>

<llo_original>
// kernel: reverse.1
$region0: #{reverse.1}
  %s0 = inlined_call_operand.vmem [shape: f32[2,4,16,7], index: 0, kind: input, shape index: {}]
  %s1 = inlined_call_operand.vmem [shape: f32[2,4,16,7], index: 1, kind: output, shape index: {}]
  $region1: #{reverse.1} parent=0
    #allocation0 [shape = 'u8[65536]{0}', space=vmem, size = 0x10000, scoped, tag = 'operand span for operand 0']
    #allocation1 [shape = 'u8[32768]{0}', space=vmem, size = 0x8000, scoped, tag = 'operand span for operand 1']
    %s2 = scalar_lea.vmem [#allocation0], 8
    // Predicated region
    $region2: #{reverse.1} parent=1 // pred_check
      _
    $region3: #{reverse.1} parent=1 // pred_check_branch
      %4 = sbr.rel (0) target = $region5
    $region4: #{reverse.1} parent=1 // pred_region
      // Predicated region
      $region6: #{reverse.1} parent=4 // pred_check
        _
      $region7: #{reverse.1} parent=4 // pred_check_branch
        %6 = sbr.rel (0) target = $region9
      $region8: #{reverse.1} parent=4 // pred_region
        // Predicated region
        $region21: #{reverse.1} parent=8 // pred_check
          _
        $region22: #{reverse.1} parent=8 // pred_check_branch
          %35 = sbr.rel (0) target = $region24
        $region23: #{reverse.1} parent=8 // pred_region
          loop: start=0, step=1, limit=1
          $region25: #{reverse.1} parent=23 // loop_pre_header
            _
          $region26: #{reverse.1} parent=23 // loop_header
            %s37 = sphi 0, %s41
            %p38 = scmp.ge.s32.totalorder %s37, 1
            %s42 = sphi %s0, %s0
            %s43 = sphi %s2, %s2
          $region27: #{reverse.1} parent=23 // loop_header_branch
            %40 = sbr.rel (%p38) target = $region31
          $region28: #{reverse.1} parent=23 // loop_body
            %v44 = vld [vmem:[%s42] sm:$0xff]
            %45 = vst [vmem:[%s43] sm:$0xff] %v44
            %v46 = vld [vmem:[%s42 + $0x8] sm:$0xff]
            %47 = vst [vmem:[%s43 + $0x10] sm:$0xff] %v46
            %v48 = vld [vmem:[%s42 + $0x10] sm:$0xff]
            %49 = vst [vmem:[%s43 + $0x20] sm:$0xff] %v48
            %v50 = vld [vmem:[%s42 + $0x18] sm:$0xff]
            %51 = vst [vmem:[%s43 + $0x30] sm:$0xff] %v50
            %v52 = vld [vmem:[%s42 + $0x20] sm:$0xff]
            %53 = vst [vmem:[%s43 + $0x40] sm:$0xff] %v52
            %v54 = vld [vmem:[%s42 + $0x28] sm:$0xff]
            %55 = vst [vmem:[%s43 + $0x50] sm:$0xff] %v54
            %v56 = vld [vmem:[%s42 + $0x30] sm:$0xff]
            %57 = vst [vmem:[%s43 + $0x60] sm:$0xff] %v56
            %v58 = vld [vmem:[%s42 + $0x38] sm:$0xff]
            %59 = vst [vmem:[%s43 + $0x70] sm:$0xff] %v58
          $region29: #{reverse.1} parent=23 // loop_footer
            %s41 = sadd.s32 1, %s37
          $region30: #{reverse.1} parent=23 // loop_footer_branch
            %36 = sbr.rel target = $region26
          $region31: #{reverse.1} parent=23 // loop_exit
            _
        $region24: #{reverse.1} parent=8 // pred_fallthru
          _
        // Predicated region
        $region32: #{reverse.1} parent=8 // pred_check
          _
        $region33: #{reverse.1} parent=8 // pred_check_branch
          %61 = sbr.rel target = $region35
        $region34: #{reverse.1} parent=8 // pred_region
          _
        $region35: #{reverse.1} parent=8 // pred_fallthru
          _
      $region9: #{reverse.1} parent=4 // pred_fallthru
        _
      // Predicated region
      $region10: #{reverse.1} parent=4 // pred_check
        _
      $region11: #{reverse.1} parent=4 // pred_check_branch
        %8 = sbr.rel target = $region13
      $region12: #{reverse.1} parent=4 // pred_region
        loop: start=0, step=1, limit=1
        $region14: #{reverse.1} parent=12 // loop_pre_header
          _
        $region15: #{reverse.1} parent=12 // loop_header
          %s11 = sphi 0, %s15
          %p12 = scmp.ge.s32.totalorder %s11, 1
          %s16 = sphi %s0, %s0
          %s17 = sphi %s2, %s2
        $region16: #{reverse.1} parent=12 // loop_header_branch
          %14 = sbr.rel (%p12) target = $region20
        $region17: #{reverse.1} parent=12 // loop_body
          %v18 = vld [vmem:[%s16] sm:$0xff]
          %19 = vst [vmem:[%s17] sm:$0xff] %v18
          %v20 = vld [vmem:[%s16 + $0x8] sm:$0xff]
          %21 = vst [vmem:[%s17 + $0x10] sm:$0xff] %v20
          %v22 = vld [vmem:[%s16 + $0x10] sm:$0xff]
          %23 = vst [vmem:[%s17 + $0x20] sm:$0xff] %v22
          %v24 = vld [vmem:[%s16 + $0x18] sm:$0xff]
          %25 = vst [vmem:[%s17 + $0x30] sm:$0xff] %v24
          %v26 = vld [vmem:[%s16 + $0x20] sm:$0xff]
          %27 = vst [vmem:[%s17 + $0x40] sm:$0xff] %v26
          %v28 = vld [vmem:[%s16 + $0x28] sm:$0xff]
          %29 = vst [vmem:[%s17 + $0x50] sm:$0xff] %v28
          %v30 = vld [vmem:[%s16 + $0x30] sm:$0xff]
          %31 = vst [vmem:[%s17 + $0x60] sm:$0xff] %v30
          %v32 = vld [vmem:[%s16 + $0x38] sm:$0xff]
          %33 = vst [vmem:[%s17 + $0x70] sm:$0xff] %v32
        $region18: #{reverse.1} parent=12 // loop_footer
          %s15 = sadd.s32 1, %s11
        $region19: #{reverse.1} parent=12 // loop_footer_branch
          %10 = sbr.rel target = $region15
        $region20: #{reverse.1} parent=12 // loop_exit
          _
      $region13: #{reverse.1} parent=4 // pred_fallthru
        _
    $region5: #{reverse.1} parent=1 // pred_fallthru
      _
    %62 = vnop
    %s63 = scalar_lea.vmem [#allocation0], 7
    %v64 = vld [vmem:[%s63] ss:$-1 sm:$0xff]
    %v65 = vrot.slane %v64, 1
    %66 = vst [vmem:[#allocation1] sm:$0xff] %v65
    %s67 = scalar_lea.vmem [#allocation0], 8
    %s68 = scalar_lea.vmem %s67, 7 [#allocation0]
    %v69 = vld [vmem:[%s68] ss:$-1 sm:$0xff]
    %v70 = vrot.slane %v69, 1
    %v71 = vlaneseq
    %v72 = vshrl.u32 %v71, 7
    %vm73 = vcmp.lt.s32.totalorder %v72, 7
    %74 = vst.msk [vmem:[#allocation1] sm:$0xff] %vm73, %v70
    %s75 = scalar_lea.vmem [#allocation1], 8
    %s76 = scalar_lea.vmem [#allocation0], 16
    %s77 = scalar_lea.vmem %s76, 7 [#allocation0]
    %v78 = vld [vmem:[%s77] ss:$-1 sm:$0xff]
    %v79 = vrot.slane %v78, 1
    %80 = vst [vmem:[%s75] sm:$0xff] %v79
    %s81 = scalar_lea.vmem %s76, 8 [#allocation0]
    %s82 = scalar_lea.vmem %s81, 7 [#allocation0]
    %v83 = vld [vmem:[%s82] ss:$-1 sm:$0xff]
    %v84 = vrot.slane %v83, 1
    %v85 = vlaneseq
    %v86 = vshrl.u32 %v85, 7
    %vm87 = vcmp.lt.s32.totalorder %v86, 7
    %88 = vst.msk [vmem:[%s75] sm:$0xff] %vm87, %v84
    %s89 = scalar_lea.vmem [#allocation1], 16
    %s90 = scalar_lea.vmem [#allocation0], 32
    %s91 = scalar_lea.vmem %s90, 7 [#allocation0]
    %v92 = vld [vmem:[%s91] ss:$-1 sm:$0xff]
    %v93 = vrot.slane %v92, 1
    %94 = vst [vmem:[%s89] sm:$0xff] %v93
    %s95 = scalar_lea.vmem %s90, 8 [#allocation0]
    %s96 = scalar_lea.vmem %s95, 7 [#allocation0]
    %v97 = vld [vmem:[%s96] ss:$-1 sm:$0xff]
    %v98 = vrot.slane %v97, 1
    %v99 = vlaneseq
    %v100 = vshrl.u32 %v99, 7
    %vm101 = vcmp.lt.s32.totalorder %v100, 7
    %102 = vst.msk [vmem:[%s89] sm:$0xff] %vm101, %v98
    %s103 = scalar_lea.vmem [#allocation1], 24
    %s104 = scalar_lea.vmem [#allocation0], 48
    %s105 = scalar_lea.vmem %s104, 7 [#allocation0]
    %v106 = vld [vmem:[%s105] ss:$-1 sm:$0xff]
    %v107 = vrot.slane %v106, 1
    %108 = vst [vmem:[%s103] sm:$0xff] %v107
    %s109 = scalar_lea.vmem %s104, 8 [#allocation0]
    %s110 = scalar_lea.vmem %s109, 7 [#allocation0]
    %v111 = vld [vmem:[%s110] ss:$-1 sm:$0xff]
    %v112 = vrot.slane %v111, 1
    %v113 = vlaneseq
    %v114 = vshrl.u32 %v113, 7
    %vm115 = vcmp.lt.s32.totalorder %v114, 7
    %116 = vst.msk [vmem:[%s103] sm:$0xff] %vm115, %v112
    %s117 = scalar_lea.vmem [#allocation1], 32
    %s118 = scalar_lea.vmem [#allocation0], 64
    %s119 = scalar_lea.vmem %s118, 7 [#allocation0]
    %v120 = vld [vmem:[%s119] ss:$-1 sm:$0xff]
    %v121 = vrot.slane %v120, 1
    %122 = vst [vmem:[%s117] sm:$0xff] %v121
    %s123 = scalar_lea.vmem %s118, 8 [#allocation0]
    %s124 = scalar_lea.vmem %s123, 7 [#allocation0]
    %v125 = vld [vmem:[%s124] ss:$-1 sm:$0xff]
    %v126 = vrot.slane %v125, 1
    %v127 = vlaneseq
    %v128 = vshrl.u32 %v127, 7
    %vm129 = vcmp.lt.s32.totalorder %v128, 7
    %130 = vst.msk [vmem:[%s117] sm:$0xff] %vm129, %v126
    %s131 = scalar_lea.vmem [#allocation1], 40
    %s132 = scalar_lea.vmem [#allocation0], 80
    %s133 = scalar_lea.vmem %s132, 7 [#allocation0]
    %v134 = vld [vmem:[%s133] ss:$-1 sm:$0xff]
    %v135 = vrot.slane %v134, 1
    %136 = vst [vmem:[%s131] sm:$0xff] %v135
    %s137 = scalar_lea.vmem %s132, 8 [#allocation0]
    %s138 = scalar_lea.vmem %s137, 7 [#allocation0]
    %v139 = vld [vmem:[%s138] ss:$-1 sm:$0xff]
    %v140 = vrot.slane %v139, 1
    %v141 = vlaneseq
    %v142 = vshrl.u32 %v141, 7
    %vm143 = vcmp.lt.s32.totalorder %v142, 7
    %144 = vst.msk [vmem:[%s131] sm:$0xff] %vm143, %v140
    %s145 = scalar_lea.vmem [#allocation1], 48
    %s146 = scalar_lea.vmem [#allocation0], 96
    %s147 = scalar_lea.vmem %s146, 7 [#allocation0]
    %v148 = vld [vmem:[%s147] ss:$-1 sm:$0xff]
    %v149 = vrot.slane %v148, 1
    %150 = vst [vmem:[%s145] sm:$0xff] %v149
    %s151 = scalar_lea.vmem %s146, 8 [#allocation0]
    %s152 = scalar_lea.vmem %s151, 7 [#allocation0]
    %v153 = vld [vmem:[%s152] ss:$-1 sm:$0xff]
    %v154 = vrot.slane %v153, 1
    %v155 = vlaneseq
    %v156 = vshrl.u32 %v155, 7
    %vm157 = vcmp.lt.s32.totalorder %v156, 7
    %158 = vst.msk [vmem:[%s145] sm:$0xff] %vm157, %v154
    %s159 = scalar_lea.vmem [#allocation1], 56
    %s160 = scalar_lea.vmem [#allocation0], 112
    %s161 = scalar_lea.vmem %s160, 7 [#allocation0]
    %v162 = vld [vmem:[%s161] ss:$-1 sm:$0xff]
    %v163 = vrot.slane %v162, 1
    %164 = vst [vmem:[%s159] sm:$0xff] %v163
    %s165 = scalar_lea.vmem %s160, 8 [#allocation0]
    %s166 = scalar_lea.vmem %s165, 7 [#allocation0]
    %v167 = vld [vmem:[%s166] ss:$-1 sm:$0xff]
    %v168 = vrot.slane %v167, 1
    %v169 = vlaneseq
    %v170 = vshrl.u32 %v169, 7
    %vm171 = vcmp.lt.s32.totalorder %v170, 7
    %172 = vst.msk [vmem:[%s159] sm:$0xff] %vm171, %v168
    // Predicated region
    $region36: #{reverse.1} parent=1 // pred_check
      _
    $region37: #{reverse.1} parent=1 // pred_check_branch
      %174 = sbr.rel (0) target = $region39
    $region38: #{reverse.1} parent=1 // pred_region
      // Predicated region
      $region40: #{reverse.1} parent=38 // pred_check
        _
      $region41: #{reverse.1} parent=38 // pred_check_branch
        %176 = sbr.rel (0) target = $region43
      $region42: #{reverse.1} parent=38 // pred_region
        // Predicated region
        $region55: #{reverse.1} parent=42 // pred_check
          _
        $region56: #{reverse.1} parent=42 // pred_check_branch
          %205 = sbr.rel (0) target = $region58
        $region57: #{reverse.1} parent=42 // pred_region
          loop: start=0, step=1, limit=1
          $region59: #{reverse.1} parent=57 // loop_pre_header
            _
          $region60: #{reverse.1} parent=57 // loop_header
            %s207 = sphi 0, %s211
            %p208 = scmp.ge.s32.totalorder %s207, 1
            %s212 = sphi [#allocation1], [#allocation1]
            %s213 = sphi %s1, %s1
          $region61: #{reverse.1} parent=57 // loop_header_branch
            %210 = sbr.rel (%p208) target = $region65
          $region62: #{reverse.1} parent=57 // loop_body
            %v214 = vld [vmem:[%s212] sm:$0xff]
            %215 = vst [vmem:[%s213] sm:$0xff] %v214
            %v216 = vld [vmem:[%s212 + $0x8] sm:$0xff]
            %217 = vst [vmem:[%s213 + $0x8] sm:$0xff] %v216
            %v218 = vld [vmem:[%s212 + $0x10] sm:$0xff]
            %219 = vst [vmem:[%s213 + $0x10] sm:$0xff] %v218
            %v220 = vld [vmem:[%s212 + $0x18] sm:$0xff]
            %221 = vst [vmem:[%s213 + $0x18] sm:$0xff] %v220
            %v222 = vld [vmem:[%s212 + $0x20] sm:$0xff]
            %223 = vst [vmem:[%s213 + $0x20] sm:$0xff] %v222
            %v224 = vld [vmem:[%s212 + $0x28] sm:$0xff]
            %225 = vst [vmem:[%s213 + $0x28] sm:$0xff] %v224
            %v226 = vld [vmem:[%s212 + $0x30] sm:$0xff]
            %227 = vst [vmem:[%s213 + $0x30] sm:$0xff] %v226
            %v228 = vld [vmem:[%s212 + $0x38] sm:$0xff]
            %229 = vst [vmem:[%s213 + $0x38] sm:$0xff] %v228
          $region63: #{reverse.1} parent=57 // loop_footer
            %s211 = sadd.s32 1, %s207
          $region64: #{reverse.1} parent=57 // loop_footer_branch
            %206 = sbr.rel target = $region60
          $region65: #{reverse.1} parent=57 // loop_exit
            _
        $region58: #{reverse.1} parent=42 // pred_fallthru
          _
        // Predicated region
        $region66: #{reverse.1} parent=42 // pred_check
          _
        $region67: #{reverse.1} parent=42 // pred_check_branch
          %231 = sbr.rel target = $region69
        $region68: #{reverse.1} parent=42 // pred_region
          _
        $region69: #{reverse.1} parent=42 // pred_fallthru
          _
      $region43: #{reverse.1} parent=38 // pred_fallthru
        _
      // Predicated region
      $region44: #{reverse.1} parent=38 // pred_check
        _
      $region45: #{reverse.1} parent=38 // pred_check_branch
        %178 = sbr.rel target = $region47
      $region46: #{reverse.1} parent=38 // pred_region
        loop: start=0, step=1, limit=1
        $region48: #{reverse.1} parent=46 // loop_pre_header
          _
        $region49: #{reverse.1} parent=46 // loop_header
          %s181 = sphi 0, %s185
          %p182 = scmp.ge.s32.totalorder %s181, 1
          %s186 = sphi [#allocation1], [#allocation1]
          %s187 = sphi %s1, %s1
        $region50: #{reverse.1} parent=46 // loop_header_branch
          %184 = sbr.rel (%p182) target = $region54
        $region51: #{reverse.1} parent=46 // loop_body
          %v188 = vld [vmem:[%s186] sm:$0xff]
          %189 = vst [vmem:[%s187] sm:$0xff] %v188
          %v190 = vld [vmem:[%s186 + $0x8] sm:$0xff]
          %191 = vst [vmem:[%s187 + $0x8] sm:$0xff] %v190
          %v192 = vld [vmem:[%s186 + $0x10] sm:$0xff]
          %193 = vst [vmem:[%s187 + $0x10] sm:$0xff] %v192
          %v194 = vld [vmem:[%s186 + $0x18] sm:$0xff]
          %195 = vst [vmem:[%s187 + $0x18] sm:$0xff] %v194
          %v196 = vld [vmem:[%s186 + $0x20] sm:$0xff]
          %197 = vst [vmem:[%s187 + $0x20] sm:$0xff] %v196
          %v198 = vld [vmem:[%s186 + $0x28] sm:$0xff]
          %199 = vst [vmem:[%s187 + $0x28] sm:$0xff] %v198
          %v200 = vld [vmem:[%s186 + $0x30] sm:$0xff]
          %201 = vst [vmem:[%s187 + $0x30] sm:$0xff] %v200
          %v202 = vld [vmem:[%s186 + $0x38] sm:$0xff]
          %203 = vst [vmem:[%s187 + $0x38] sm:$0xff] %v202
        $region52: #{reverse.1} parent=46 // loop_footer
          %s185 = sadd.s32 1, %s181
        $region53: #{reverse.1} parent=46 // loop_footer_branch
          %180 = sbr.rel target = $region49
        $region54: #{reverse.1} parent=46 // loop_exit
          _
      $region47: #{reverse.1} parent=38 // pred_fallthru
        _
    $region39: #{reverse.1} parent=1 // pred_fallthru
      _
    %232 = vnop

// kernel: fourier_unit_forward.2
$region0: #{fourier_unit_forward.2}
  #allocation0 [shape = 'u32[]', space=smem, size = 0x4, offset = 0x4, fixed_abs, tag = 'smem constant byte address 0x4 - core index']
  #allocation1 [shape = 'u32[144,128]{1,0:T(1,128)}', space=vmem, size = 0x12000, scoped, tag = 'internal scratch']
  %s0 = inlined_call_operand.vmem [shape: f32[8,288], index: 0, kind: input, shape index: {}]
  %s1 = inlined_call_operand.vmem [shape: f32[8,8], index: 1, kind: input, shape index: {}]
  %s2 = inlined_call_operand.vmem [shape: f32[1,8,1], index: 2, kind: output, shape index: {0}]
  %s3 = inlined_call_operand.vmem [shape: f32[1,8,1], index: 3, kind: output, shape index: {1}]
  %4 = xla_tuple %s2, %s3
  %s5 = sld [smem:[#allocation0]]
  $region26: #{fourier_unit_forward.2} parent=0
    _
  %s7 = ssub.s32 1, %s5
  %s8 = scalar_select 0, %s7, %s5
  // Predicated region
  $region2: #{fourier_unit_forward.2} parent=0 // pred_check
    _
  $region3: #{fourier_unit_forward.2} parent=0 // pred_check_branch
    %10 = sbr.rel (0) target = $region5
  $region4: #{fourier_unit_forward.2} parent=0 // pred_region
    _
  $region5: #{fourier_unit_forward.2} parent=0 // pred_fallthru
    _
  // Predicated region
  $region6: #{fourier_unit_forward.2} parent=0 // pred_check
    _
  $region7: #{fourier_unit_forward.2} parent=0 // pred_check_branch
    %12 = sbr.rel (0) target = $region9
  $region8: #{fourier_unit_forward.2} parent=0 // pred_region
    _
  $region9: #{fourier_unit_forward.2} parent=0 // pred_fallthru
    _
  %v13 = vld [vmem:[%s1] sm:$0xff]
  %v14 = vld [vmem:[%s0] sm:$0xff]
  %v15 = vld [vmem:[%s0 + $0x8] sm:$0xff]
  %v16 = vld [vmem:[%s0 + $0x10] sm:$0xff]
  %vm17 = vcmask 64512
  %v19 = vsel %vm17, %v13, 0
  %21 = vmatprep.subr.mxu0 %v15
  %22 = vmatpush1.msra.mxu0 %v14
  %23 = vmatprep.subr.mxu0 0.0
  %24 = vmatpush1.msra.mxu0 0.0
  %25 = vmatprep.subr.mxu0 0.0
  %26 = vmatpush1.msra.mxu0 0.0
  %27 = vmatprep.subr.mxu0 0.0
  %28 = vmatpush1.msra.mxu0 0.0
  %29 = vmatprep.subr.mxu0 0.0
  %30 = vmatpush1.msra.mxu0 0.0
  %31 = vmatprep.subr.mxu0 0.0
  %32 = vmatpush1.msra.mxu0 0.0
  %33 = vmatprep.subr.mxu0 0.0
  %34 = vmatpush1.msra.mxu0 0.0
  %35 = vmatprep.subr.mxu0 0.0
  %36 = vmatpush1.msra.mxu0 0.0
  %37 = vmatprep.subr.mxu0 0.0
  %38 = vmatpush1.msra.mxu0 0.0
  %39 = vmatprep.subr.mxu0 0.0
  %40 = vmatpush1.msra.mxu0 0.0
  %41 = vmatprep.subr.mxu0 0.0
  %42 = vmatpush1.msra.mxu0 0.0
  %43 = vmatprep.subr.mxu0 0.0
  %44 = vmatpush1.msra.mxu0 0.0
  %45 = vmatprep.subr.mxu0 0.0
  %46 = vmatpush1.msra.mxu0 0.0
  %47 = vmatprep.subr.mxu0 0.0
  %48 = vmatpush1.msra.mxu0 0.0
  %49 = vmatprep.subr.mxu0 0.0
  %50 = vmatpush1.msra.mxu0 0.0
  %51 = vmatprep.subr.mxu0 0.0
  %52 = vmatpush1.msra.mxu0 0.0
  %53 = vmatprep.subr.mxu0 0.0
  %54 = vmatpush1.msra.mxu0 0.0
  %55 = vmatprep.subr.mxu0 0.0
  %56 = vmatpush1.msra.mxu0 0.0
  %57 = vmatprep.subr.mxu0 0.0
  %58 = vmatpush1.msra.mxu0 0.0
  %59 = vmatprep.subr.mxu0 0.0
  %60 = vmatpush1.msra.mxu0 0.0
  %61 = vmatprep.subr.mxu0 0.0
  %62 = vmatpush1.msra.mxu0 0.0
  %63 = vmatprep.subr.mxu0 0.0
  %64 = vmatpush1.msra.mxu0 0.0
  %65 = vmatprep.subr.mxu0 0.0
  %66 = vmatpush1.msra.mxu0 0.0
  %67 = vmatprep.subr.mxu0 0.0
  %68 = vmatpush1.msra.mxu0 0.0
  %69 = vmatprep.subr.mxu0 0.0
  %70 = vmatpush1.msra.mxu0 0.0
  %71 = vmatprep.subr.mxu0 0.0
  %72 = vmatpush1.msra.mxu0 0.0
  %73 = vmatprep.subr.mxu0 0.0
  %74 = vmatpush1.msra.mxu0 0.0
  %75 = vmatprep.subr.mxu0 0.0
  %76 = vmatpush1.msra.mxu0 0.0
  %77 = vmatprep.subr.mxu0 0.0
  %78 = vmatpush1.msra.mxu0 0.0
  %79 = vmatprep.subr.mxu0 0.0
  %80 = vmatpush1.msra.mxu0 0.0
  %81 = vmatprep.subr.mxu0 0.0
  %82 = vmatpush1.msra.mxu0 0.0
  %83 = vmatprep.subr.mxu0 0.0
  %84 = vmatpush1.msra.mxu0 0.0
  %85 = vmatprep.mubr.f32.mxu0 0.0
  %86 = vmatmul.mubr.f32.gmra.mrb[0].mxu0 %v19
  %v87 = vpop.f32.mrb[0].mxu0
  %v88 = vadd.f32 0.0, %v87
  %v89 = vpop.f32.mrb[0].mxu0
  %v90 = vadd.f32 0.0, %v89
  %91 = vdwg.mxu0
  %92 = vmatprep.subr.mxu0 0.0
  %93 = vmatpush1.msra.mxu0 %v16
  %94 = vmatprep.subr.mxu0 0.0
  %95 = vmatpush1.msra.mxu0 0.0
  %96 = vmatprep.subr.mxu0 0.0
  %97 = vmatpush1.msra.mxu0 0.0
  %98 = vmatprep.subr.mxu0 0.0
  %99 = vmatpush1.msra.mxu0 0.0
  %100 = vmatprep.subr.mxu0 0.0
  %101 = vmatpush1.msra.mxu0 0.0
  %102 = vmatprep.subr.mxu0 0.0
  %103 = vmatpush1.msra.mxu0 0.0
  %104 = vmatprep.subr.mxu0 0.0
  %105 = vmatpush1.msra.mxu0 0.0
  %106 = vmatprep.subr.mxu0 0.0
  %107 = vmatpush1.msra.mxu0 0.0
  %108 = vmatprep.subr.mxu0 0.0
  %109 = vmatpush1.msra.mxu0 0.0
  %110 = vmatprep.subr.mxu0 0.0
  %111 = vmatpush1.msra.mxu0 0.0
  %112 = vmatprep.subr.mxu0 0.0
  %113 = vmatpush1.msra.mxu0 0.0
  %114 = vmatprep.subr.mxu0 0.0
  %115 = vmatpush1.msra.mxu0 0.0
  %116 = vmatprep.subr.mxu0 0.0
  %117 = vmatpush1.msra.mxu0 0.0
  %118 = vmatprep.subr.mxu0 0.0
  %119 = vmatpush1.msra.mxu0 0.0
  %120 = vmatprep.subr.mxu0 0.0
  %121 = vmatpush1.msra.mxu0 0.0
  %122 = vmatprep.subr.mxu0 0.0
  %123 = vmatpush1.msra.mxu0 0.0
  %124 = vmatprep.subr.mxu0 0.0
  %125 = vmatpush1.msra.mxu0 0.0
  %126 = vmatprep.subr.mxu0 0.0
  %127 = vmatpush1.msra.mxu0 0.0
  %128 = vmatprep.subr.mxu0 0.0
  %129 = vmatpush1.msra.mxu0 0.0
  %130 = vmatprep.subr.mxu0 0.0
  %131 = vmatpush1.msra.mxu0 0.0
  %132 = vmatprep.subr.mxu0 0.0
  %133 = vmatpush1.msra.mxu0 0.0
  %134 = vmatprep.subr.mxu0 0.0
  %135 = vmatpush1.msra.mxu0 0.0
  %136 = vmatprep.subr.mxu0 0.0
  %137 = vmatpush1.msra.mxu0 0.0
  %138 = vmatprep.subr.mxu0 0.0
  %139 = vmatpush1.msra.mxu0 0.0
  %140 = vmatprep.subr.mxu0 0.0
  %141 = vmatpush1.msra.mxu0 0.0
  %142 = vmatprep.subr.mxu0 0.0
  %143 = vmatpush1.msra.mxu0 0.0
  %144 = vmatprep.subr.mxu0 0.0
  %145 = vmatpush1.msra.mxu0 0.0
  %146 = vmatprep.subr.mxu0 0.0
  %147 = vmatpush1.msra.mxu0 0.0
  %148 = vmatprep.subr.mxu0 0.0
  %149 = vmatpush1.msra.mxu0 0.0
  %150 = vmatprep.subr.mxu0 0.0
  %151 = vmatpush1.msra.mxu0 0.0
  %152 = vmatprep.subr.mxu0 0.0
  %153 = vmatpush1.msra.mxu0 0.0
  %154 = vmatprep.subr.mxu0 0.0
  %155 = vmatpush1.msra.mxu0 0.0
  %156 = vmatprep.mubr.f32.mxu0 0.0
  %157 = vmatmul.mubr.f32.gmra.mrb[0].mxu0 %v19
  %v158 = vpop.f32.mrb[0].mxu0
  %v159 = vadd.f32 0.0, %v158
  %v160 = vpop.f32.mrb[0].mxu0
  %161 = vdwg.mxu0
  %s162 = smul.u32 0, 384
  %v163 = vlaneseq
  %v164 = vand.u32 %v163, 127
  %v165 = vadd.s32 %v164, 128
  %v166 = vadd.s32 %v164, 256
  %v167 = vstv %s162
  %v168 = vadd.s32 %v167, %v164
  %v169 = vadd.s32 %v167, %v165
  %v170 = vadd.s32 %v167, %v166
  %vm171 = vcmp.lt.s32.totalorder %v168, 288
  %vm172 = vcmp.lt.s32.totalorder %v169, 288
  %vm173 = vcmp.lt.s32.totalorder %v170, 288
  %v174 = vsel %vm171, 1, 0
  %v175 = vsel %vm172, 1, 0
  %v176 = vsel %vm173, 1, 0
  %vm177 = vcmp.eq.s32.totalorder %v174, 1
  %vm178 = vcmp.eq.s32.totalorder %v175, 1
  %vm179 = vcmp.eq.s32.totalorder %v176, 1
  %v180 = vsel %vm177, %v88, 0.0
  %v181 = vsel %vm178, %v90, 0.0
  %v182 = vsel %vm179, %v159, 0.0
  %v183 = vadd.f32 %v180, %v181
  %v184 = vadd.f32 %v183, %v182
  %185 = vadd.xlane.f32.xlu0 %v184
  %v186 = vpop.xlane.xlu0 %185
  %vm187 = vcmask 7168
  %188 = vst.msk [vmem:[%s2] sm:$0xff] %vm187, %v186
  %v189 = vmul.f32 %v180, %v180
  %v190 = vmul.f32 %v181, %v181
  %v191 = vmul.f32 %v182, %v182
  %v192 = vadd.f32 %v189, %v190
  %v193 = vadd.f32 %v192, %v191
  %194 = vadd.xlane.f32.xlu0 %v193
  %v195 = vpop.xlane.xlu0 %194
  %196 = vst.msk [vmem:[%s3] sm:$0xff] %vm187, %v195
  // Predicated region
  $region10: #{fourier_unit_forward.2} parent=0 // pred_check
    _
  $region11: #{fourier_unit_forward.2} parent=0 // pred_check_branch
    %198 = sbr.rel (0) target = $region13
  $region12: #{fourier_unit_forward.2} parent=0 // pred_region
    _
  $region13: #{fourier_unit_forward.2} parent=0 // pred_fallthru
    _
  // Predicated region
  $region14: #{fourier_unit_forward.2} parent=0 // pred_check
    _
  $region15: #{fourier_unit_forward.2} parent=0 // pred_check_branch
    %200 = sbr.rel (0) target = $region17
  $region16: #{fourier_unit_forward.2} parent=0 // pred_region
    _
  $region17: #{fourier_unit_forward.2} parent=0 // pred_fallthru
    _
  // Predicated region
  $region18: #{fourier_unit_forward.2} parent=0 // pred_check
    _
  $region19: #{fourier_unit_forward.2} parent=0 // pred_check_branch
    %202 = sbr.rel (0) target = $region21
  $region20: #{fourier_unit_forward.2} parent=0 // pred_region
    _
  $region21: #{fourier_unit_forward.2} parent=0 // pred_fallthru
    _
  // Predicated region
  $region22: #{fourier_unit_forward.2} parent=0 // pred_check
    _
  $region23: #{fourier_unit_forward.2} parent=0 // pred_check_branch
    %204 = sbr.rel (0) target = $region25
  $region24: #{fourier_unit_forward.2} parent=0 // pred_region
    _
  $region25: #{fourier_unit_forward.2} parent=0 // pred_fallthru
    _

// kernel: fourier_unit_forward.3
$region0: #{fourier_unit_forward.3}
  #allocation0 [shape = 'u32[]', space=smem, size = 0x4, offset = 0x4, fixed_abs, tag = 'smem constant byte address 0x4 - core index']
  #allocation1 [shape = 'u32[144,128]{1,0:T(1,128)}', space=vmem, size = 0x12000, scoped, tag = 'internal scratch']
  %s0 = inlined_call_operand.vmem [shape: f32[8,288], index: 0, kind: input, shape index: {}]
  %s1 = inlined_call_operand.vmem [shape: f32[8,8], index: 1, kind: input, shape index: {}]
  %s2 = inlined_call_operand.vmem [shape: f32[8,1], index: 2, kind: input, shape index: {}]
  %s3 = inlined_call_operand.vmem [shape: f32[8,1], index: 3, kind: input, shape index: {}]
  %s4 = inlined_call_operand.vmem [shape: f32[8,288], index: 4, kind: output, shape index: {}]
  %s5 = sld [smem:[#allocation0]]
  $region26: #{fourier_unit_forward.3} parent=0
    _
  %s7 = ssub.s32 1, %s5
  %s8 = scalar_select 0, %s7, %s5
  // Predicated region
  $region2: #{fourier_unit_forward.3} parent=0 // pred_check
    _
  $region3: #{fourier_unit_forward.3} parent=0 // pred_check_branch
    %10 = sbr.rel (0) target = $region5
  $region4: #{fourier_unit_forward.3} parent=0 // pred_region
    _
  $region5: #{fourier_unit_forward.3} parent=0 // pred_fallthru
    _
  // Predicated region
  $region6: #{fourier_unit_forward.3} parent=0 // pred_check
    _
  $region7: #{fourier_unit_forward.3} parent=0 // pred_check_branch
    %12 = sbr.rel (0) target = $region9
  $region8: #{fourier_unit_forward.3} parent=0 // pred_region
    _
  $region9: #{fourier_unit_forward.3} parent=0 // pred_fallthru
    _
  // Predicated region
  $region10: #{fourier_unit_forward.3} parent=0 // pred_check
    _
  $region11: #{fourier_unit_forward.3} parent=0 // pred_check_branch
    %14 = sbr.rel (0) target = $region13
  $region12: #{fourier_unit_forward.3} parent=0 // pred_region
    _
  $region13: #{fourier_unit_forward.3} parent=0 // pred_fallthru
    _
  // Predicated region
  $region14: #{fourier_unit_forward.3} parent=0 // pred_check
    _
  $region15: #{fourier_unit_forward.3} parent=0 // pred_check_branch
    %16 = sbr.rel (0) target = $region17
  $region16: #{fourier_unit_forward.3} parent=0 // pred_region
    _
  $region17: #{fourier_unit_forward.3} parent=0 // pred_fallthru
    _
  %v17 = vld [vmem:[%s1] sm:$0xff]
  %v18 = vld [vmem:[%s0] sm:$0xff]
  %v19 = vld [vmem:[%s0 + $0x8] sm:$0xff]
  %v20 = vld [vmem:[%s0 + $0x10] sm:$0xff]
  %vm21 = vcmask 64512
  %v23 = vsel %vm21, %v17, 0
  %25 = vmatprep.subr.mxu0 %v19
  %26 = vmatpush1.msra.mxu0 %v18
  %27 = vmatprep.subr.mxu0 0.0
  %28 = vmatpush1.msra.mxu0 0.0
  %29 = vmatprep.subr.mxu0 0.0
  %30 = vmatpush1.msra.mxu0 0.0
  %31 = vmatprep.subr.mxu0 0.0
  %32 = vmatpush1.msra.mxu0 0.0
  %33 = vmatprep.subr.mxu0 0.0
  %34 = vmatpush1.msra.mxu0 0.0
  %35 = vmatprep.subr.mxu0 0.0
  %36 = vmatpush1.msra.mxu0 0.0
  %37 = vmatprep.subr.mxu0 0.0
  %38 = vmatpush1.msra.mxu0 0.0
  %39 = vmatprep.subr.mxu0 0.0
  %40 = vmatpush1.msra.mxu0 0.0
  %41 = vmatprep.subr.mxu0 0.0
  %42 = vmatpush1.msra.mxu0 0.0
  %43 = vmatprep.subr.mxu0 0.0
  %44 = vmatpush1.msra.mxu0 0.0
  %45 = vmatprep.subr.mxu0 0.0
  %46 = vmatpush1.msra.mxu0 0.0
  %47 = vmatprep.subr.mxu0 0.0
  %48 = vmatpush1.msra.mxu0 0.0
  %49 = vmatprep.subr.mxu0 0.0
  %50 = vmatpush1.msra.mxu0 0.0
  %51 = vmatprep.subr.mxu0 0.0
  %52 = vmatpush1.msra.mxu0 0.0
  %53 = vmatprep.subr.mxu0 0.0
  %54 = vmatpush1.msra.mxu0 0.0
  %55 = vmatprep.subr.mxu0 0.0
  %56 = vmatpush1.msra.mxu0 0.0
  %57 = vmatprep.subr.mxu0 0.0
  %58 = vmatpush1.msra.mxu0 0.0
  %59 = vmatprep.subr.mxu0 0.0
  %60 = vmatpush1.msra.mxu0 0.0
  %61 = vmatprep.subr.mxu0 0.0
  %62 = vmatpush1.msra.mxu0 0.0
  %63 = vmatprep.subr.mxu0 0.0
  %64 = vmatpush1.msra.mxu0 0.0
  %65 = vmatprep.subr.mxu0 0.0
  %66 = vmatpush1.msra.mxu0 0.0
  %67 = vmatprep.subr.mxu0 0.0
  %68 = vmatpush1.msra.mxu0 0.0
  %69 = vmatprep.subr.mxu0 0.0
  %70 = vmatpush1.msra.mxu0 0.0
  %71 = vmatprep.subr.mxu0 0.0
  %72 = vmatpush1.msra.mxu0 0.0
  %73 = vmatprep.subr.mxu0 0.0
  %74 = vmatpush1.msra.mxu0 0.0
  %75 = vmatprep.subr.mxu0 0.0
  %76 = vmatpush1.msra.mxu0 0.0
  %77 = vmatprep.subr.mxu0 0.0
  %78 = vmatpush1.msra.mxu0 0.0
  %79 = vmatprep.subr.mxu0 0.0
  %80 = vmatpush1.msra.mxu0 0.0
  %81 = vmatprep.subr.mxu0 0.0
  %82 = vmatpush1.msra.mxu0 0.0
  %83 = vmatprep.subr.mxu0 0.0
  %84 = vmatpush1.msra.mxu0 0.0
  %85 = vmatprep.subr.mxu0 0.0
  %86 = vmatpush1.msra.mxu0 0.0
  %87 = vmatprep.subr.mxu0 0.0
  %88 = vmatpush1.msra.mxu0 0.0
  %89 = vmatprep.mubr.f32.mxu0 0.0
  %90 = vmatmul.mubr.f32.gmra.mrb[0].mxu0 %v23
  %v91 = vpop.f32.mrb[0].mxu0
  %v92 = vadd.f32 0.0, %v91
  %v93 = vpop.f32.mrb[0].mxu0
  %v94 = vadd.f32 0.0, %v93
  %95 = vdwg.mxu0
  %96 = vmatprep.subr.mxu0 0.0
  %97 = vmatpush1.msra.mxu0 %v20
  %98 = vmatprep.subr.mxu0 0.0
  %99 = vmatpush1.msra.mxu0 0.0
  %100 = vmatprep.subr.mxu0 0.0
  %101 = vmatpush1.msra.mxu0 0.0
  %102 = vmatprep.subr.mxu0 0.0
  %103 = vmatpush1.msra.mxu0 0.0
  %104 = vmatprep.subr.mxu0 0.0
  %105 = vmatpush1.msra.mxu0 0.0
  %106 = vmatprep.subr.mxu0 0.0
  %107 = vmatpush1.msra.mxu0 0.0
  %108 = vmatprep.subr.mxu0 0.0
  %109 = vmatpush1.msra.mxu0 0.0
  %110 = vmatprep.subr.mxu0 0.0
  %111 = vmatpush1.msra.mxu0 0.0
  %112 = vmatprep.subr.mxu0 0.0
  %113 = vmatpush1.msra.mxu0 0.0
  %114 = vmatprep.subr.mxu0 0.0
  %115 = vmatpush1.msra.mxu0 0.0
  %116 = vmatprep.subr.mxu0 0.0
  %117 = vmatpush1.msra.mxu0 0.0
  %118 = vmatprep.subr.mxu0 0.0
  %119 = vmatpush1.msra.mxu0 0.0
  %120 = vmatprep.subr.mxu0 0.0
  %121 = vmatpush1.msra.mxu0 0.0
  %122 = vmatprep.subr.mxu0 0.0
  %123 = vmatpush1.msra.mxu0 0.0
  %124 = vmatprep.subr.mxu0 0.0
  %125 = vmatpush1.msra.mxu0 0.0
  %126 = vmatprep.subr.mxu0 0.0
  %127 = vmatpush1.msra.mxu0 0.0
  %128 = vmatprep.subr.mxu0 0.0
  %129 = vmatpush1.msra.mxu0 0.0
  %130 = vmatprep.subr.mxu0 0.0
  %131 = vmatpush1.msra.mxu0 0.0
  %132 = vmatprep.subr.mxu0 0.0
  %133 = vmatpush1.msra.mxu0 0.0
  %134 = vmatprep.subr.mxu0 0.0
  %135 = vmatpush1.msra.mxu0 0.0
  %136 = vmatprep.subr.mxu0 0.0
  %137 = vmatpush1.msra.mxu0 0.0
  %138 = vmatprep.subr.mxu0 0.0
  %139 = vmatpush1.msra.mxu0 0.0
  %140 = vmatprep.subr.mxu0 0.0
  %141 = vmatpush1.msra.mxu0 0.0
  %142 = vmatprep.subr.mxu0 0.0
  %143 = vmatpush1.msra.mxu0 0.0
  %144 = vmatprep.subr.mxu0 0.0
  %145 = vmatpush1.msra.mxu0 0.0
  %146 = vmatprep.subr.mxu0 0.0
  %147 = vmatpush1.msra.mxu0 0.0
  %148 = vmatprep.subr.mxu0 0.0
  %149 = vmatpush1.msra.mxu0 0.0
  %150 = vmatprep.subr.mxu0 0.0
  %151 = vmatpush1.msra.mxu0 0.0
  %152 = vmatprep.subr.mxu0 0.0
  %153 = vmatpush1.msra.mxu0 0.0
  %154 = vmatprep.subr.mxu0 0.0
  %155 = vmatpush1.msra.mxu0 0.0
  %156 = vmatprep.subr.mxu0 0.0
  %157 = vmatpush1.msra.mxu0 0.0
  %158 = vmatprep.subr.mxu0 0.0
  %159 = vmatpush1.msra.mxu0 0.0
  %160 = vmatprep.mubr.f32.mxu0 0.0
  %161 = vmatmul.mubr.f32.gmra.mrb[0].mxu0 %v23
  %v162 = vpop.f32.mrb[0].mxu0
  %v163 = vadd.f32 0.0, %v162
  %v164 = vpop.f32.mrb[0].mxu0
  %165 = vdwg.mxu0
  %v166 = vld [vmem:[%s2] sm:$0xff]
  %168 = vset.pattern.permute.xlu0 0
  %169 = vperm.xlu0 %168, %v166
  %v170 = vpop.permute.xlu0 %169
  %v172 = vmul.f32 %v92, %v170
  %v173 = vmul.f32 %v94, %v170
  %v174 = vmul.f32 %v163, %v170
  %v175 = vld [vmem:[%s3] sm:$0xff]
  %177 = vset.pattern.permute.xlu0 0
  %178 = vperm.xlu0 %177, %v175
  %v179 = vpop.permute.xlu0 %178
  %v181 = vadd.f32 %v172, %v179
  %v182 = vadd.f32 %v173, %v179
  %v183 = vadd.f32 %v174, %v179
  %v184 = vmax.f32 %v181, 0.0
  %v185 = vmax.f32 %v182, 0.0
  %v186 = vmax.f32 %v183, 0.0
  %187 = vst [vmem:[%s4] sm:$0xff] %v184
  %188 = vst [vmem:[%s4 + $0x8] sm:$0xff] %v185
  %189 = vst [vmem:[%s4 + $0x10] sm:$0xff] %v186
  // Predicated region
  $region18: #{fourier_unit_forward.3} parent=0 // pred_check
    _
  $region19: #{fourier_unit_forward.3} parent=0 // pred_check_branch
    %191 = sbr.rel (0) target = $region21
  $region20: #{fourier_unit_forward.3} parent=0 // pred_region
    _
  $region21: #{fourier_unit_forward.3} parent=0 // pred_fallthru
    _
  // Predicated region
  $region22: #{fourier_unit_forward.3} parent=0 // pred_check
    _
  $region23: #{fourier_unit_forward.3} parent=0 // pred_check_branch
    %193 = sbr.rel (0) target = $region25
  $region24: #{fourier_unit_forward.3} parent=0 // pred_region
    _
  $region25: #{fourier_unit_forward.3} parent=0 // pred_fallthru
    _

</llo_original>
